<compile_context>
chip_gen: v5e
topology: v5e:2x2
jax: 0.10.0
libtpu: 0.0.40
codegen_flags: <defaults>
</compile_context>

<pallas_src>
import functools

import jax
import jax.numpy as jnp
import numpy as np
from jax.experimental import pallas as pl
from jax.experimental.pallas import tpu as pltpu

HID = 128   # hidden feature dims (50/30/10) zero-padded to one lane tile
OUT = 3     # fc4 output width kept natural -> narrow (masked) output store


def _round_up(v, m):
    return ((v + m - 1) // m) * m


def _pad2d(x, rows, cols):
    r, c = x.shape
    return jnp.pad(x, ((0, rows - r), (0, cols - c)))


def mlp_kernel(x_ref, w1_ref, w2_ref, w3_ref, w4_ref, b123_ref, b4_ref, o_ref):
    """relu(relu(relu(x W1 + b1) W2 + b2) W3 + b3) W4 + b4 for one batch tile."""
    x = x_ref[...].astype(jnp.bfloat16)          # (T, d_in)  bf16 MXU input
    b = b123_ref[...]                            # (3, HID)   f32

    h = jnp.dot(x, w1_ref[...], preferred_element_type=jnp.float32)
    h = jnp.maximum(h + b[0:1, :], 0.0).astype(jnp.bfloat16)

    h = jnp.dot(h, w2_ref[...], preferred_element_type=jnp.float32)
    h = jnp.maximum(h + b[1:2, :], 0.0).astype(jnp.bfloat16)

    h = jnp.dot(h, w3_ref[...], preferred_element_type=jnp.float32)
    h = jnp.maximum(h + b[2:3, :], 0.0).astype(jnp.bfloat16)

    out = jnp.dot(h, w4_ref[...], preferred_element_type=jnp.float32)
    o_ref[...] = (out + b4_ref[...]).astype(o_ref.dtype)


@functools.partial(jax.jit, static_argnames=("tile_b",))
def mlp_forward(x, params, tile_b=256):
    """x: (B, dim_input) float32.  params: dict of (in,out) weights + (out,) biases."""
    bsz, d_in = x.shape

    # Batch tile: multiple of 8 sublanes, capped at the (rounded-up) batch.
    tile = min(tile_b, _round_up(bsz, 8))
    tile = max(8, (tile // 8) * 8)
    grid = (pl.cdiv(bsz, tile),)

    # Weights stored as (in, out); zero-pad hidden dims to 128 lanes (exact math)
    # and cast to bf16 for the MXU.  fc4's output dim stays at 3.
    # (For a real deployment these would be pre-packed once, not per call.)
    w1 = _pad2d(params["w1"], d_in, HID).astype(jnp.bfloat16)   # (d_in, 128)
    w2 = _pad2d(params["w2"], HID, HID).astype(jnp.bfloat16)    # (128, 128)
    w3 = _pad2d(params["w3"], HID, HID).astype(jnp.bfloat16)    # (128, 128)
    w4 = _pad2d(params["w4"], HID, OUT).astype(jnp.bfloat16)    # (128, 3)

    b123 = jnp.stack([
        jnp.pad(params["b1"], (0, HID - params["b1"].shape[0])),
        jnp.pad(params["b2"], (0, HID - params["b2"].shape[0])),
        jnp.pad(params["b3"], (0, HID - params["b3"].shape[0])),
    ]).astype(jnp.float32)                                      # (3, 128)
    b4 = params["b4"].reshape(1, OUT).astype(jnp.float32)       # (1, 3)

    const = lambda rows, cols: pl.BlockSpec((rows, cols), lambda i: (0, 0))

    return pl.pallas_call(
        mlp_kernel,
        out_shape=jax.ShapeDtypeStruct((bsz, OUT), jnp.float32),
        grid_spec=pltpu.PrefetchScalarGridSpec(
            num_scalar_prefetch=0,
            grid=grid,
            in_specs=[
                pl.BlockSpec((tile, d_in), lambda i: (i, 0)),   # x: no HBM padding
                const(d_in, HID),   # W1
                const(HID, HID),    # W2
                const(HID, HID),    # W3
                const(HID, OUT),    # W4
                const(3, HID),      # b1..b3 packed
                const(1, OUT),      # b4
            ],
            out_specs=pl.BlockSpec((tile, OUT), lambda i: (i, 0)),
        ),
        compiler_params=pltpu.CompilerParams(
            dimension_semantics=("parallel",)),
    )(x, w1, w2, w3, w4, b123, b4)


def init_params(key, dim_input):
    """Deterministic init matching the PyTorch module's __init__ semantics."""
    dims = [dim_input, 50, 30, 10, 3]
    ks = jax.random.split(key, 8)
    params = {}
    for li in range(4):
        fan_in, fan_out = dims[li], dims[li + 1]
        if li < 3:
            # kaiming_normal_(nonlinearity='relu'): std = sqrt(2 / fan_in); bias = 0
            std = np.sqrt(2.0 / fan_in)
            w = std * jax.random.normal(ks[2 * li], (fan_in, fan_out), jnp.float32)
            bia = jnp.zeros((fan_out,), jnp.float32)
        else:
            # fc4 keeps PyTorch Linear default: U(-1/sqrt(fan_in), 1/sqrt(fan_in))
            bound = 1.0 / np.sqrt(fan_in)
            w = jax.random.uniform(ks[2 * li], (fan_in, fan_out), jnp.float32,
                                   -bound, bound)
            bia = jax.random.uniform(ks[2 * li + 1], (fan_out,), jnp.float32,
                                     -bound, bound)
        params[f"w{li + 1}"] = w
        params[f"b{li + 1}"] = bia
    return params


def mlp_reference(x, params, bf16_inputs):
    """Pure-JAX reference; bf16_inputs=True mirrors the kernel's matmul numerics."""
    cast = (lambda a: a.astype(jnp.bfloat16)) if bf16_inputs else (lambda a: a)
    h = x
    for li in range(1, 4):
        h = jnp.maximum(
            jnp.dot(cast(h), cast(params[f"w{li}"]),
                    preferred_element_type=jnp.float32) + params[f"b{li}"], 0.0)
    return (jnp.dot(cast(h), cast(params["w4"]),
                    preferred_element_type=jnp.float32) + params["b4"])


if __name__ == "__main__":
    key = jax.random.PRNGKey(0)
    k_x, k_p = jax.random.split(key)

    # Small absolute footprint (64 KiB of input) but enough rows for tile_b=256
    # to give 2 parallel grid steps (one per v7x TensorCore).
    batch, dim_input = 512, 32
    x = jax.random.normal(k_x, (batch, dim_input), jnp.float32)
    params = init_params(k_p, dim_input)

    out = jax.block_until_ready(mlp_forward(x, params))
    assert out.shape == (batch, 3), out.shape

    # Tight check vs a reference that mirrors the kernel's bf16-matmul numerics.
    ref_bf16 = mlp_reference(x, params, bf16_inputs=True)
    np.testing.assert_allclose(np.asarray(out), np.asarray(ref_bf16),
                               rtol=2e-3, atol=2e-3)
    # Sanity check vs the pure-f32 forward (bf16 matmul inputs => looser tol).
    ref_f32 = mlp_reference(x, params, bf16_inputs=False)
    np.testing.assert_allclose(np.asarray(out), np.asarray(ref_f32),
                               rtol=5e-2, atol=5e-2)
    print("KERNEL_OK")
</pallas_src>

<mosaic_0001>
module attributes {stable_mosaic.version = 11 : i64} {
  func.func @mlp_kernel(%arg0: i32, %arg1: memref<256x32xf32, #tpu.memory_space<vmem>>, %arg2: memref<32x128xbf16, #tpu.memory_space<vmem>>, %arg3: memref<128x128xbf16, #tpu.memory_space<vmem>>, %arg4: memref<128x128xbf16, #tpu.memory_space<vmem>>, %arg5: memref<128x3xbf16, #tpu.memory_space<vmem>>, %arg6: memref<3x128xf32, #tpu.memory_space<vmem>>, %arg7: memref<1x3xf32, #tpu.memory_space<vmem>>, %arg8: memref<256x3xf32, #tpu.memory_space<vmem>>) attributes {dimension_semantics = [#tpu.dimension_semantics<parallel>], iteration_bounds = array<i64: 2>, scalar_prefetch = 0 : i64, scratch_operands = 0 : i64, tpu.core_type = #tpu.core_type<tc>, window_params = [{transform_indices = @transform_0, window_bounds = array<i64: 256, 32>}, {pipeline_mode = #tpu.pipeline_mode<synchronous>, transform_indices = @transform_1, window_bounds = array<i64: 32, 128>}, {pipeline_mode = #tpu.pipeline_mode<synchronous>, transform_indices = @transform_2, window_bounds = array<i64: 128, 128>}, {pipeline_mode = #tpu.pipeline_mode<synchronous>, transform_indices = @transform_3, window_bounds = array<i64: 128, 128>}, {pipeline_mode = #tpu.pipeline_mode<synchronous>, transform_indices = @transform_4, window_bounds = array<i64: 128, 3>}, {pipeline_mode = #tpu.pipeline_mode<synchronous>, transform_indices = @transform_5, window_bounds = array<i64: 3, 128>}, {pipeline_mode = #tpu.pipeline_mode<synchronous>, transform_indices = @transform_6, window_bounds = array<i64: 1, 3>}, {transform_indices = @transform_7, window_bounds = array<i64: 256, 3>}]} {
    %c0 = arith.constant 0 : index
    %c0_0 = arith.constant 0 : index
    %0 = vector.load %arg1[%c0, %c0_0] : memref<256x32xf32, #tpu.memory_space<vmem>>, vector<256x32xf32>
    %1 = arith.truncf %0 : vector<256x32xf32> to vector<256x32xbf16>
    %c0_1 = arith.constant 0 : index
    %c0_2 = arith.constant 0 : index
    %2 = vector.load %arg6[%c0_1, %c0_2] : memref<3x128xf32, #tpu.memory_space<vmem>>, vector<3x128xf32>
    %c0_3 = arith.constant 0 : index
    %c0_4 = arith.constant 0 : index
    %3 = vector.load %arg2[%c0_3, %c0_4] : memref<32x128xbf16, #tpu.memory_space<vmem>>, vector<32x128xbf16>
    %cst = arith.constant dense<0.000000e+00> : vector<256x128xf32>
    %4 = tpu.matmul %1, %3, %cst {dimension_numbers = #tpu.dot_dimension_numbers<[1], [0], [0], [1], [0, 0, 1, 1], [], []>} : vector<256x32xbf16>, vector<32x128xbf16>, vector<256x128xf32> -> vector<256x128xf32>
    %5 = vector.extract_strided_slice %2 {offsets = [0, 0], sizes = [1, 128], strides = [1, 1]} : vector<3x128xf32> to vector<1x128xf32>
    %6 = vector.broadcast %5 : vector<1x128xf32> to vector<256x128xf32>
    %7 = arith.addf %4, %6 : vector<256x128xf32>
    %cst_5 = arith.constant 0.000000e+00 : f32
    %8 = vector.broadcast %cst_5 : f32 to vector<256x128xf32>
    %9 = arith.maximumf %7, %8 : vector<256x128xf32>
    %10 = arith.truncf %9 : vector<256x128xf32> to vector<256x128xbf16>
    %c0_6 = arith.constant 0 : index
    %c0_7 = arith.constant 0 : index
    %11 = vector.load %arg3[%c0_6, %c0_7] : memref<128x128xbf16, #tpu.memory_space<vmem>>, vector<128x128xbf16>
    %cst_8 = arith.constant dense<0.000000e+00> : vector<256x128xf32>
    %12 = tpu.matmul %10, %11, %cst_8 {dimension_numbers = #tpu.dot_dimension_numbers<[1], [0], [0], [1], [0, 0, 1, 1], [], []>} : vector<256x128xbf16>, vector<128x128xbf16>, vector<256x128xf32> -> vector<256x128xf32>
    %13 = vector.extract_strided_slice %2 {offsets = [1, 0], sizes = [1, 128], strides = [1, 1]} : vector<3x128xf32> to vector<1x128xf32>
    %14 = vector.broadcast %13 : vector<1x128xf32> to vector<256x128xf32>
    %15 = arith.addf %12, %14 : vector<256x128xf32>
    %cst_9 = arith.constant 0.000000e+00 : f32
    %16 = vector.broadcast %cst_9 : f32 to vector<256x128xf32>
    %17 = arith.maximumf %15, %16 : vector<256x128xf32>
    %18 = arith.truncf %17 : vector<256x128xf32> to vector<256x128xbf16>
    %c0_10 = arith.constant 0 : index
    %c0_11 = arith.constant 0 : index
    %19 = vector.load %arg4[%c0_10, %c0_11] : memref<128x128xbf16, #tpu.memory_space<vmem>>, vector<128x128xbf16>
    %cst_12 = arith.constant dense<0.000000e+00> : vector<256x128xf32>
    %20 = tpu.matmul %18, %19, %cst_12 {dimension_numbers = #tpu.dot_dimension_numbers<[1], [0], [0], [1], [0, 0, 1, 1], [], []>} : vector<256x128xbf16>, vector<128x128xbf16>, vector<256x128xf32> -> vector<256x128xf32>
    %21 = vector.extract_strided_slice %2 {offsets = [2, 0], sizes = [1, 128], strides = [1, 1]} : vector<3x128xf32> to vector<1x128xf32>
    %22 = vector.broadcast %21 : vector<1x128xf32> to vector<256x128xf32>
    %23 = arith.addf %20, %22 : vector<256x128xf32>
    %cst_13 = arith.constant 0.000000e+00 : f32
    %24 = vector.broadcast %cst_13 : f32 to vector<256x128xf32>
    %25 = arith.maximumf %23, %24 : vector<256x128xf32>
    %26 = arith.truncf %25 : vector<256x128xf32> to vector<256x128xbf16>
    %c0_14 = arith.constant 0 : index
    %c0_15 = arith.constant 0 : index
    %27 = vector.load %arg5[%c0_14, %c0_15] : memref<128x3xbf16, #tpu.memory_space<vmem>>, vector<128x3xbf16>
    %cst_16 = arith.constant dense<0.000000e+00> : vector<256x3xf32>
    %28 = tpu.matmul %26, %27, %cst_16 {dimension_numbers = #tpu.dot_dimension_numbers<[1], [0], [0], [1], [0, 0, 1, 1], [], []>} : vector<256x128xbf16>, vector<128x3xbf16>, vector<256x3xf32> -> vector<256x3xf32>
    %c0_17 = arith.constant 0 : index
    %c0_18 = arith.constant 0 : index
    %29 = vector.load %arg7[%c0_17, %c0_18] : memref<1x3xf32, #tpu.memory_space<vmem>>, vector<1x3xf32>
    %30 = vector.broadcast %29 : vector<1x3xf32> to vector<256x3xf32>
    %31 = arith.addf %28, %30 : vector<256x3xf32>
    %c0_19 = arith.constant 0 : index
    %c0_20 = arith.constant 0 : index
    %32 = vector.load %arg8[%c0_19, %c0_20] : memref<256x3xf32, #tpu.memory_space<vmem>>, vector<256x3xf32>
    tpu.vector_store %arg8[%c0_19, %c0_20], %31 {strides = array<i32>} : memref<256x3xf32, #tpu.memory_space<vmem>>, vector<256x3xf32>,
    return
  }
  func.func @transform_0(%arg0: i32) -> (i32, i32) {
    %c0_i32 = arith.constant 0 : i32
    %c0_i32_0 = arith.constant 0 : i32
    return %arg0, %c0_i32 : i32, i32
  }
  func.func @transform_1(%arg0: i32) -> (i32, i32) {
    %c0_i32 = arith.constant 0 : i32
    %c0_i32_0 = arith.constant 0 : i32
    %c0_i32_1 = arith.constant 0 : i32
    return %c0_i32, %c0_i32_0 : i32, i32
  }
  func.func @transform_2(%arg0: i32) -> (i32, i32) {
    %c0_i32 = arith.constant 0 : i32
    %c0_i32_0 = arith.constant 0 : i32
    %c0_i32_1 = arith.constant 0 : i32
    return %c0_i32, %c0_i32_0 : i32, i32
  }
  func.func @transform_3(%arg0: i32) -> (i32, i32) {
    %c0_i32 = arith.constant 0 : i32
    %c0_i32_0 = arith.constant 0 : i32
    %c0_i32_1 = arith.constant 0 : i32
    return %c0_i32, %c0_i32_0 : i32, i32
  }
  func.func @transform_4(%arg0: i32) -> (i32, i32) {
    %c0_i32 = arith.constant 0 : i32
    %c0_i32_0 = arith.constant 0 : i32
    %c0_i32_1 = arith.constant 0 : i32
    return %c0_i32, %c0_i32_0 : i32, i32
  }
  func.func @transform_5(%arg0: i32) -> (i32, i32) {
    %c0_i32 = arith.constant 0 : i32
    %c0_i32_0 = arith.constant 0 : i32
    %c0_i32_1 = arith.constant 0 : i32
    return %c0_i32, %c0_i32_0 : i32, i32
  }
  func.func @transform_6(%arg0: i32) -> (i32, i32) {
    %c0_i32 = arith.constant 0 : i32
    %c0_i32_0 = arith.constant 0 : i32
    %c0_i32_1 = arith.constant 0 : i32
    return %c0_i32, %c0_i32_0 : i32, i32
  }
  func.func @transform_7(%arg0: i32) -> (i32, i32) {
    %c0_i32 = arith.constant 0 : i32
    %c0_i32_0 = arith.constant 0 : i32
    return %arg0, %c0_i32 : i32, i32
  }
}

</mosaic_0001>

<llo_original>
// kernel: mlp_forward.1
$region0: #{mlp_forward.1}
  #allocation0 [shape = 'u32[]', space=smem, size = 0x4, offset = 0x4, fixed_abs, tag = 'smem constant byte address 0x4 - core index']
  #allocation1 [shape = 'u32[72,128]{1,0:T(1,128)}', space=vmem, size = 0x9000, scoped, tag = 'internal scratch']
  %s0 = inlined_call_operand.vmem [shape: f32[512,32], index: 0, kind: input, shape index: {}]
  %s1 = inlined_call_operand.vmem [shape: bf16[32,128], index: 1, kind: input, shape index: {}]
  %s2 = inlined_call_operand.vmem [shape: bf16[128,128], index: 2, kind: input, shape index: {}]
  %s3 = inlined_call_operand.vmem [shape: bf16[128,128], index: 3, kind: input, shape index: {}]
  %s4 = inlined_call_operand.vmem [shape: bf16[128,3], index: 4, kind: input, shape index: {}]
  %s5 = inlined_call_operand.vmem [shape: f32[3,128], index: 5, kind: input, shape index: {}]
  %s6 = inlined_call_operand.vmem [shape: f32[1,3], index: 6, kind: input, shape index: {}]
  %s7 = inlined_call_operand.vmem [shape: f32[512,3], index: 7, kind: output, shape index: {}]
  %s8 = sld [smem:[#allocation0]]
  $region61: #{mlp_forward.1} parent=0
    _
  %s10 = ssub.s32 1, %s8
  %s11 = scalar_select 0, %s10, %s8
  loop: start=0, step=1, limit=4
  $region2: #{mlp_forward.1} parent=0 // loop_pre_header
    _
  $region3: #{mlp_forward.1} parent=0 // loop_header
    %s13 = sphi 0, %s17
    %p14 = scmp.ge.s32.totalorder %s13, 4
    %s23 = sphi 0, %s25
    %s26 = sphi 0, %s23
    %s27 = sphi 0, %s26
    %s43 = sphi 0, %s27
    %s47 = sphi 0, %s47
    %s49 = sphi 0, %s47
    %s50 = sphi 0, %s49
    %s64 = sphi 0, %s50
    %s68 = sphi 0, %s68
    %s70 = sphi 0, %s68
    %s71 = sphi 0, %s70
    %s85 = sphi 0, %s71
    %s89 = sphi 0, %s89
    %s91 = sphi 0, %s89
    %s92 = sphi 0, %s91
    %s106 = sphi 0, %s92
    %s110 = sphi 0, %s110
    %s112 = sphi 0, %s110
    %s113 = sphi 0, %s112
    %s127 = sphi 0, %s113
    %s131 = sphi 0, %s131
    %s133 = sphi 0, %s131
    %s134 = sphi 0, %s133
    %s148 = sphi 0, %s134
    %s152 = sphi 0, %s152
    %s154 = sphi 0, %s152
    %s155 = sphi 0, %s154
    %s169 = sphi 0, %s155
    %s175 = sphi 0, %s177
    %s178 = sphi 0, %s175
    %s179 = sphi 0, %s178
    %s195 = sphi 0, %s179
  $region4: #{mlp_forward.1} parent=0 // loop_header_branch
    %16 = sbr.rel (%p14) target = $region8
  $region5: #{mlp_forward.1} parent=0 // loop_body
    %s18 = ssub.s32 %s13, 1
    %s19 = ssub.s32 %s13, 2
    %s20 = sadd.s32 %s13, 1
    %s21 = ssub.s32 %s13, %s20
    %p22 = scmp.eq.s32.totalorder %s21, 0
    %s24 = sadd.s32 %s23, 1
    %s25 = scalar_select %p22, %s23, %s24
    %p28 = pneg %p22
    %p29 = scmp.eq.s32.totalorder %s13, 1
    %p30 = por %p28, %p29
    %p31 = scmp.ne.s32.totalorder %s23, %s26
    %p32 = scmp.eq.s32.totalorder %s13, 0
    %p33 = por %p31, %p32
    %p34 = scmp.ne.s32.totalorder %s23, %s26
    %p35 = scmp.eq.s32.totalorder %s18, 1
    %p36 = por %p34, %p35
    %p37 = scmp.ne.s32.totalorder %s26, %s27
    %p38 = scmp.eq.s32.totalorder %s18, 0
    %p39 = por %p37, %p38
    %p40 = scmp.ne.s32.totalorder %s26, %s27
    %p41 = scmp.eq.s32.totalorder %s19, 1
    %p42 = por %p40, %p41
    %p44 = scmp.ne.s32.totalorder %s27, %s43
    %p45 = scmp.eq.s32.totalorder %s19, 0
    %p46 = por %p44, %p45
    %s48 = sadd.s32 %s47, 1
    %p51 = scmp.eq.s32.totalorder %s13, 1
    %p52 = scmp.ne.s32.totalorder %s47, %s49
    %p53 = scmp.eq.s32.totalorder %s13, 0
    %p54 = por %p52, %p53
    %p55 = scmp.ne.s32.totalorder %s47, %s49
    %p56 = scmp.eq.s32.totalorder %s18, 1
    %p57 = por %p55, %p56
    %p58 = scmp.ne.s32.totalorder %s49, %s50
    %p59 = scmp.eq.s32.totalorder %s18, 0
    %p60 = por %p58, %p59
    %p61 = scmp.ne.s32.totalorder %s49, %s50
    %p62 = scmp.eq.s32.totalorder %s19, 1
    %p63 = por %p61, %p62
    %p65 = scmp.ne.s32.totalorder %s50, %s64
    %p66 = scmp.eq.s32.totalorder %s19, 0
    %p67 = por %p65, %p66
    %s69 = sadd.s32 %s68, 1
    %p72 = scmp.eq.s32.totalorder %s13, 1
    %p73 = scmp.ne.s32.totalorder %s68, %s70
    %p74 = scmp.eq.s32.totalorder %s13, 0
    %p75 = por %p73, %p74
    %p76 = scmp.ne.s32.totalorder %s68, %s70
    %p77 = scmp.eq.s32.totalorder %s18, 1
    %p78 = por %p76, %p77
    %p79 = scmp.ne.s32.totalorder %s70, %s71
    %p80 = scmp.eq.s32.totalorder %s18, 0
    %p81 = por %p79, %p80
    %p82 = scmp.ne.s32.totalorder %s70, %s71
    %p83 = scmp.eq.s32.totalorder %s19, 1
    %p84 = por %p82, %p83
    %p86 = scmp.ne.s32.totalorder %s71, %s85
    %p87 = scmp.eq.s32.totalorder %s19, 0
    %p88 = por %p86, %p87
    %s90 = sadd.s32 %s89, 1
    %p93 = scmp.eq.s32.totalorder %s13, 1
    %p94 = scmp.ne.s32.totalorder %s89, %s91
    %p95 = scmp.eq.s32.totalorder %s13, 0
    %p96 = por %p94, %p95
    %p97 = scmp.ne.s32.totalorder %s89, %s91
    %p98 = scmp.eq.s32.totalorder %s18, 1
    %p99 = por %p97, %p98
    %p100 = scmp.ne.s32.totalorder %s91, %s92
    %p101 = scmp.eq.s32.totalorder %s18, 0
    %p102 = por %p100, %p101
    %p103 = scmp.ne.s32.totalorder %s91, %s92
    %p104 = scmp.eq.s32.totalorder %s19, 1
    %p105 = por %p103, %p104
    %p107 = scmp.ne.s32.totalorder %s92, %s106
    %p108 = scmp.eq.s32.totalorder %s19, 0
    %p109 = por %p107, %p108
    %s111 = sadd.s32 %s110, 1
    %p114 = scmp.eq.s32.totalorder %s13, 1
    %p115 = scmp.ne.s32.totalorder %s110, %s112
    %p116 = scmp.eq.s32.totalorder %s13, 0
    %p117 = por %p115, %p116
    %p118 = scmp.ne.s32.totalorder %s110, %s112
    %p119 = scmp.eq.s32.totalorder %s18, 1
    %p120 = por %p118, %p119
    %p121 = scmp.ne.s32.totalorder %s112, %s113
    %p122 = scmp.eq.s32.totalorder %s18, 0
    %p123 = por %p121, %p122
    %p124 = scmp.ne.s32.totalorder %s112, %s113
    %p125 = scmp.eq.s32.totalorder %s19, 1
    %p126 = por %p124, %p125
    %p128 = scmp.ne.s32.totalorder %s113, %s127
    %p129 = scmp.eq.s32.totalorder %s19, 0
    %p130 = por %p128, %p129
    %s132 = sadd.s32 %s131, 1
    %p135 = scmp.eq.s32.totalorder %s13, 1
    %p136 = scmp.ne.s32.totalorder %s131, %s133
    %p137 = scmp.eq.s32.totalorder %s13, 0
    %p138 = por %p136, %p137
    %p139 = scmp.ne.s32.totalorder %s131, %s133
    %p140 = scmp.eq.s32.totalorder %s18, 1
    %p141 = por %p139, %p140
    %p142 = scmp.ne.s32.totalorder %s133, %s134
    %p143 = scmp.eq.s32.totalorder %s18, 0
    %p144 = por %p142, %p143
    %p145 = scmp.ne.s32.totalorder %s133, %s134
    %p146 = scmp.eq.s32.totalorder %s19, 1
    %p147 = por %p145, %p146
    %p149 = scmp.ne.s32.totalorder %s134, %s148
    %p150 = scmp.eq.s32.totalorder %s19, 0
    %p151 = por %p149, %p150
    %s153 = sadd.s32 %s152, 1
    %p156 = scmp.eq.s32.totalorder %s13, 1
    %p157 = scmp.ne.s32.totalorder %s152, %s154
    %p158 = scmp.eq.s32.totalorder %s13, 0
    %p159 = por %p157, %p158
    %p160 = scmp.ne.s32.totalorder %s152, %s154
    %p161 = scmp.eq.s32.totalorder %s18, 1
    %p162 = por %p160, %p161
    %p163 = scmp.ne.s32.totalorder %s154, %s155
    %p164 = scmp.eq.s32.totalorder %s18, 0
    %p165 = por %p163, %p164
    %p166 = scmp.ne.s32.totalorder %s154, %s155
    %p167 = scmp.eq.s32.totalorder %s19, 1
    %p168 = por %p166, %p167
    %p170 = scmp.ne.s32.totalorder %s155, %s169
    %p171 = scmp.eq.s32.totalorder %s19, 0
    %p172 = por %p170, %p171
    %s173 = ssub.s32 %s13, %s20
    %p174 = scmp.eq.s32.totalorder %s173, 0
    %s176 = sadd.s32 %s175, 1
    %s177 = scalar_select %p174, %s175, %s176
    %p180 = pneg %p174
    %p181 = scmp.eq.s32.totalorder %s13, 1
    %p182 = por %p180, %p181
    %p183 = scmp.ne.s32.totalorder %s175, %s178
    %p184 = scmp.eq.s32.totalorder %s13, 0
    %p185 = por %p183, %p184
    %p186 = scmp.ne.s32.totalorder %s175, %s178
    %p187 = scmp.eq.s32.totalorder %s18, 1
    %p188 = por %p186, %p187
    %p189 = scmp.ne.s32.totalorder %s178, %s179
    %p190 = scmp.eq.s32.totalorder %s18, 0
    %p191 = por %p189, %p190
    %p192 = scmp.ne.s32.totalorder %s178, %s179
    %p193 = scmp.eq.s32.totalorder %s19, 1
    %p194 = por %p192, %p193
    %p196 = scmp.ne.s32.totalorder %s179, %s195
    %p197 = scmp.eq.s32.totalorder %s19, 0
    %p198 = por %p196, %p197
    %p199 = scmp.le.s32.totalorder 1, %s13
    %p200 = scmp.lt.s32.totalorder %s13, 3
    %p201 = pnand %p199, %p200
    %p202 = pneg %p201
    // Predicated region
    $region9: #{mlp_forward.1} parent=5 // pred_check
      _
    $region10: #{mlp_forward.1} parent=5 // pred_check_branch
      %204 = sbr.rel (%p201) target = $region12
    $region11: #{mlp_forward.1} parent=5 // pred_region
      %s205 = ssub.s32 %s13, 1
      // Predicated region
      $region13: #{mlp_forward.1} parent=11 // pred_check
        %p206 = pneg %p60
      $region14: #{mlp_forward.1} parent=11 // pred_check_branch
        %208 = sbr.rel (%p206) target = $region16
      $region15: #{mlp_forward.1} parent=11 // pred_region
        _
      $region16: #{mlp_forward.1} parent=11 // pred_fallthru
        _
      // Predicated region
      $region17: #{mlp_forward.1} parent=11 // pred_check
        %p209 = pneg %p81
      $region18: #{mlp_forward.1} parent=11 // pred_check_branch
        %211 = sbr.rel (%p209) target = $region20
      $region19: #{mlp_forward.1} parent=11 // pred_region
        _
      $region20: #{mlp_forward.1} parent=11 // pred_fallthru
        _
      // Predicated region
      $region21: #{mlp_forward.1} parent=11 // pred_check
        %p212 = pneg %p102
      $region22: #{mlp_forward.1} parent=11 // pred_check_branch
        %214 = sbr.rel (%p212) target = $region24
      $region23: #{mlp_forward.1} parent=11 // pred_region
        _
      $region24: #{mlp_forward.1} parent=11 // pred_fallthru
        _
      // Predicated region
      $region25: #{mlp_forward.1} parent=11 // pred_check
        %p215 = pneg %p123
      $region26: #{mlp_forward.1} parent=11 // pred_check_branch
        %217 = sbr.rel (%p215) target = $region28
      $region27: #{mlp_forward.1} parent=11 // pred_region
        _
      $region28: #{mlp_forward.1} parent=11 // pred_fallthru
        _
      // Predicated region
      $region29: #{mlp_forward.1} parent=11 // pred_check
        %p218 = pneg %p144
      $region30: #{mlp_forward.1} parent=11 // pred_check_branch
        %220 = sbr.rel (%p218) target = $region32
      $region31: #{mlp_forward.1} parent=11 // pred_region
        _
      $region32: #{mlp_forward.1} parent=11 // pred_fallthru
        _
      // Predicated region
      $region33: #{mlp_forward.1} parent=11 // pred_check
        %p221 = pneg %p165
      $region34: #{mlp_forward.1} parent=11 // pred_check_branch
        %223 = sbr.rel (%p221) target = $region36
      $region35: #{mlp_forward.1} parent=11 // pred_region
        _
      $region36: #{mlp_forward.1} parent=11 // pred_fallthru
        _
    $region12: #{mlp_forward.1} parent=5 // pred_fallthru
      _
    %p224 = scmp.lt.s32.totalorder %s13, 2
    // Predicated region
    $region37: #{mlp_forward.1} parent=5 // pred_check
      %p225 = pneg %p224
    $region38: #{mlp_forward.1} parent=5 // pred_check_branch
      %227 = sbr.rel (%p225) target = $region40
    $region39: #{mlp_forward.1} parent=5 // pred_region
      // Predicated region
      $region41: #{mlp_forward.1} parent=39 // pred_check
        %p228 = pneg %p33
      $region42: #{mlp_forward.1} parent=39 // pred_check_branch
        %230 = sbr.rel (%p228) target = $region44
      $region43: #{mlp_forward.1} parent=39 // pred_region
        %s231 = smul.u32 32, %s13
        %p232 = scmp.lt.s32.totalorder %s231, 63
        %s233 = scalar_select %p232, %s231, 63
        %s234 = smul.addr %s233, 8
        %s235 = scalar_lea.vmem %s0, %s234
        %s236 = smul.u32 32, %s13
      $region44: #{mlp_forward.1} parent=39 // pred_fallthru
        _
    $region40: #{mlp_forward.1} parent=5 // pred_fallthru
      _
    %p237 = scmp.le.s32.totalorder 1, %s13
    %p238 = scmp.lt.s32.totalorder %s13, 3
    %p239 = pnand %p237, %p238
    %p240 = pneg %p239
    // Predicated region
    $region45: #{mlp_forward.1} parent=5 // pred_check
      _
    $region46: #{mlp_forward.1} parent=5 // pred_check_branch
      %242 = sbr.rel (%p239) target = $region48
    $region47: #{mlp_forward.1} parent=5 // pred_region
      %s243 = ssub.s32 %s13, 1
      %s244 = smul.u32 32, %s18
      %p245 = scmp.lt.s32.totalorder %s244, 63
      %s246 = scalar_select %p245, %s244, 63
      %s247 = smul.addr %s246, 8
      %s248 = scalar_lea.vmem %s0, %s247
      %p249 = pneg %p39
      %p250 = pneg %p36
      %p251 = pneg %p60
      %p252 = pneg %p57
      %p253 = pneg %p81
      %p254 = pneg %p78
      %p255 = pneg %p102
      %p256 = pneg %p99
      %p257 = pneg %p123
      %p258 = pneg %p120
      %p259 = pneg %p144
      %p260 = pneg %p141
      %p261 = pneg %p165
      %p262 = pneg %p162
      %p263 = pneg %p191
      %p264 = pneg %p188
      %s265 = smul.u32 32, %s18
      %p266 = scmp.lt.s32.totalorder %s265, 63
      %s267 = scalar_select %p266, %s265, 63
      %s268 = smul.addr %s267, 8
      %s269 = scalar_lea.vmem %s7, %s268
      %s270 = smul.u32 32, %s18
      %p271 = scmp.lt.s32.totalorder %s270, 63
      %s272 = scalar_select %p271, %s270, 63
      %s273 = smul.addr %s272, 8
      %s274 = scalar_lea.vmem %s0, %s273
      %s275 = smul.u32 32, %s18
      %s276 = smul.u32 32, %s18
      %p277 = scmp.lt.s32.totalorder %s276, 63
      %s278 = scalar_select %p277, %s276, 63
      %s279 = smul.addr %s278, 8
      %s280 = scalar_lea.vmem %s7, %s279
      %s281 = smul.u32 32, %s18
      %v283 = vld [vmem:[%s274] sm:$0xff]
      %v284 = vld [vmem:[%s274 + $0x8] sm:$0xff]
      %v285 = vld [vmem:[%s274 + $0x10] sm:$0xff]
      %v286 = vld [vmem:[%s274 + $0x18] sm:$0xff]
      %v287 = vld [vmem:[%s274 + $0x20] sm:$0xff]
      %v288 = vld [vmem:[%s274 + $0x28] sm:$0xff]
      %v289 = vld [vmem:[%s274 + $0x30] sm:$0xff]
      %v290 = vld [vmem:[%s274 + $0x38] sm:$0xff]
      %v291 = vld [vmem:[%s274 + $0x40] sm:$0xff]
      %v292 = vld [vmem:[%s274 + $0x48] sm:$0xff]
      %v293 = vld [vmem:[%s274 + $0x50] sm:$0xff]
      %v294 = vld [vmem:[%s274 + $0x58] sm:$0xff]
      %v295 = vld [vmem:[%s274 + $0x60] sm:$0xff]
      %v296 = vld [vmem:[%s274 + $0x68] sm:$0xff]
      %v297 = vld [vmem:[%s274 + $0x70] sm:$0xff]
      %v298 = vld [vmem:[%s274 + $0x78] sm:$0xff]
      %v299 = vld [vmem:[%s274 + $0x80] sm:$0xff]
      %v300 = vld [vmem:[%s274 + $0x88] sm:$0xff]
      %v301 = vld [vmem:[%s274 + $0x90] sm:$0xff]
      %v302 = vld [vmem:[%s274 + $0x98] sm:$0xff]
      %v303 = vld [vmem:[%s274 + $0xa0] sm:$0xff]
      %v304 = vld [vmem:[%s274 + $0xa8] sm:$0xff]
      %v305 = vld [vmem:[%s274 + $0xb0] sm:$0xff]
      %v306 = vld [vmem:[%s274 + $0xb8] sm:$0xff]
      %v307 = vld [vmem:[%s274 + $0xc0] sm:$0xff]
      %v308 = vld [vmem:[%s274 + $0xc8] sm:$0xff]
      %v309 = vld [vmem:[%s274 + $0xd0] sm:$0xff]
      %v310 = vld [vmem:[%s274 + $0xd8] sm:$0xff]
      %v311 = vld [vmem:[%s274 + $0xe0] sm:$0xff]
      %v312 = vld [vmem:[%s274 + $0xe8] sm:$0xff]
      %v313 = vld [vmem:[%s274 + $0xf0] sm:$0xff]
      %v314 = vld [vmem:[%s274 + $0xf8] sm:$0xff]
      %v315 = vpack.c.bf16 %v284, %v283
      %v316 = vpack.c.bf16 %v286, %v285
      %v317 = vpack.c.bf16 %v288, %v287
      %v318 = vpack.c.bf16 %v290, %v289
      %v319 = vpack.c.bf16 %v292, %v291
      %v320 = vpack.c.bf16 %v294, %v293
      %v321 = vpack.c.bf16 %v296, %v295
      %v322 = vpack.c.bf16 %v298, %v297
      %v323 = vpack.c.bf16 %v300, %v299
      %v324 = vpack.c.bf16 %v302, %v301
      %v325 = vpack.c.bf16 %v304, %v303
      %v326 = vpack.c.bf16 %v306, %v305
      %v327 = vpack.c.bf16 %v308, %v307
      %v328 = vpack.c.bf16 %v310, %v309
      %v329 = vpack.c.bf16 %v312, %v311
      %v330 = vpack.c.bf16 %v314, %v313
      %v331 = vld [vmem:[%s5] sm:$0x7]
      %v332 = vld [vmem:[%s1] sm:$0xf]
      %v333 = vld [vmem:[%s1 + $0x4] sm:$0xf]
      %v334 = vld [vmem:[%s1 + $0x8] sm:$0xf]
      %v335 = vld [vmem:[%s1 + $0xc] sm:$0xf]
      %v336 = vperm.slane %v331, 0
      %v341 = vunpack.c.l.b16 %v332
      %v342 = vunpack.c.l.b16 %v333
      %v343 = vunpack.c.l.b16 %v334
      %v344 = vunpack.c.l.b16 %v335
      %v345 = vpack.c.b16 %v342, %v341
      %v346 = vpack.c.b16 %v344, %v343
      %vm349 = vcmask 261120
      %v351 = vsel %vm349, %v315, 0
      %v354 = vsel %vm349, %v316, 0
      %v357 = vsel %vm349, %v317, 0
      %v360 = vsel %vm349, %v318, 0
      %v363 = vsel %vm349, %v319, 0
      %v366 = vsel %vm349, %v320, 0
      %v369 = vsel %vm349, %v321, 0
      %v372 = vsel %vm349, %v322, 0
      %v375 = vsel %vm349, %v323, 0
      %v378 = vsel %vm349, %v324, 0
      %v381 = vsel %vm349, %v325, 0
      %v384 = vsel %vm349, %v326, 0
      %v387 = vsel %vm349, %v327, 0
      %v390 = vsel %vm349, %v328, 0
      %v393 = vsel %vm349, %v329, 0
      %v396 = vsel %vm349, %v330, 0
      %398 = vmatpush.bf16.msra.mxu0 0
      %399 = vmatpush.bf16.msra.mxu0 0
      %400 = vmatpush.bf16.msra.mxu0 0
      %401 = vmatpush.bf16.msra.mxu0 0
      %402 = vmatpush.bf16.msra.mxu0 0
      %403 = vmatpush.bf16.msra.mxu0 0
      %404 = vmatpush.bf16.msra.mxu0 %v346
      %405 = vmatpush.bf16.msra.mxu0 %v345
      %406 = vmatmul.bf16.gmra.mxu0 %v351
      %v407 = vpop.f32.mrf.mxu0
      %v408 = vadd.f32 %v336, %v407
      %v409 = vpop.f32.mrf.mxu0
      %v410 = vadd.f32 %v336, %v409
      %411 = vmatmul.bf16.gmra.mxu0 %v354
      %v412 = vpop.f32.mrf.mxu0
      %v413 = vadd.f32 %v336, %v412
      %v414 = vpop.f32.mrf.mxu0
      %v415 = vadd.f32 %v336, %v414
      %416 = vmatmul.bf16.gmra.mxu0 %v357
      %v417 = vpop.f32.mrf.mxu0
      %v418 = vadd.f32 %v336, %v417
      %v419 = vpop.f32.mrf.mxu0
      %v420 = vadd.f32 %v336, %v419
      %421 = vmatmul.bf16.gmra.mxu0 %v360
      %v422 = vpop.f32.mrf.mxu0
      %v423 = vadd.f32 %v336, %v422
      %v424 = vpop.f32.mrf.mxu0
      %v425 = vadd.f32 %v336, %v424
      %426 = vmatmul.bf16.gmra.mxu0 %v363
      %v427 = vpop.f32.mrf.mxu0
      %v428 = vadd.f32 %v336, %v427
      %v429 = vpop.f32.mrf.mxu0
      %v430 = vadd.f32 %v336, %v429
      %431 = vmatmul.bf16.gmra.mxu0 %v366
      %v432 = vpop.f32.mrf.mxu0
      %v433 = vadd.f32 %v336, %v432
      %v434 = vpop.f32.mrf.mxu0
      %v435 = vadd.f32 %v336, %v434
      %436 = vmatmul.bf16.gmra.mxu0 %v369
      %v437 = vpop.f32.mrf.mxu0
      %v438 = vadd.f32 %v336, %v437
      %v439 = vpop.f32.mrf.mxu0
      %v440 = vadd.f32 %v336, %v439
      %441 = vmatmul.bf16.gmra.mxu0 %v372
      %v442 = vpop.f32.mrf.mxu0
      %v443 = vadd.f32 %v336, %v442
      %v444 = vpop.f32.mrf.mxu0
      %v445 = vadd.f32 %v336, %v444
      %446 = vmatmul.bf16.gmra.mxu0 %v375
      %v447 = vpop.f32.mrf.mxu0
      %v448 = vadd.f32 %v336, %v447
      %v449 = vpop.f32.mrf.mxu0
      %v450 = vadd.f32 %v336, %v449
      %451 = vmatmul.bf16.gmra.mxu0 %v378
      %v452 = vpop.f32.mrf.mxu0
      %v453 = vadd.f32 %v336, %v452
      %v454 = vpop.f32.mrf.mxu0
      %v455 = vadd.f32 %v336, %v454
      %456 = vmatmul.bf16.gmra.mxu0 %v381
      %v457 = vpop.f32.mrf.mxu0
      %v458 = vadd.f32 %v336, %v457
      %v459 = vpop.f32.mrf.mxu0
      %v460 = vadd.f32 %v336, %v459
      %461 = vmatmul.bf16.gmra.mxu0 %v384
      %v462 = vpop.f32.mrf.mxu0
      %v463 = vadd.f32 %v336, %v462
      %v464 = vpop.f32.mrf.mxu0
      %v465 = vadd.f32 %v336, %v464
      %466 = vmatmul.bf16.gmra.mxu0 %v387
      %v467 = vpop.f32.mrf.mxu0
      %v468 = vadd.f32 %v336, %v467
      %v469 = vpop.f32.mrf.mxu0
      %v470 = vadd.f32 %v336, %v469
      %471 = vmatmul.bf16.gmra.mxu0 %v390
      %v472 = vpop.f32.mrf.mxu0
      %v473 = vadd.f32 %v336, %v472
      %v474 = vpop.f32.mrf.mxu0
      %v475 = vadd.f32 %v336, %v474
      %476 = vmatmul.bf16.gmra.mxu0 %v393
      %v477 = vpop.f32.mrf.mxu0
      %v478 = vadd.f32 %v336, %v477
      %v479 = vpop.f32.mrf.mxu0
      %v480 = vadd.f32 %v336, %v479
      %481 = vmatmul.bf16.gmra.mxu0 %v396
      %v482 = vpop.f32.mrf.mxu0
      %v483 = vadd.f32 %v336, %v482
      %v484 = vpop.f32.mrf.mxu0
      %v485 = vadd.f32 %v336, %v484
      %486 = vdwg.mxu0
      %v487 = vmax.f32 %v408, 0.0
      %v488 = vmax.f32 %v410, 0.0
      %v489 = vmax.f32 %v413, 0.0
      %v490 = vmax.f32 %v415, 0.0
      %v491 = vmax.f32 %v418, 0.0
      %v492 = vmax.f32 %v420, 0.0
      %v493 = vmax.f32 %v423, 0.0
      %v494 = vmax.f32 %v425, 0.0
      %v495 = vmax.f32 %v428, 0.0
      %v496 = vmax.f32 %v430, 0.0
      %v497 = vmax.f32 %v433, 0.0
      %v498 = vmax.f32 %v435, 0.0
      %v499 = vmax.f32 %v438, 0.0
      %v500 = vmax.f32 %v440, 0.0
      %v501 = vmax.f32 %v443, 0.0
      %v502 = vmax.f32 %v445, 0.0
      %v503 = vmax.f32 %v448, 0.0
      %v504 = vmax.f32 %v450, 0.0
      %v505 = vmax.f32 %v453, 0.0
      %v506 = vmax.f32 %v455, 0.0
      %v507 = vmax.f32 %v458, 0.0
      %v508 = vmax.f32 %v460, 0.0
      %v509 = vmax.f32 %v463, 0.0
      %v510 = vmax.f32 %v465, 0.0
      %v511 = vmax.f32 %v468, 0.0
      %v512 = vmax.f32 %v470, 0.0
      %v513 = vmax.f32 %v473, 0.0
      %v514 = vmax.f32 %v475, 0.0
      %v515 = vmax.f32 %v478, 0.0
      %v516 = vmax.f32 %v480, 0.0
      %v517 = vmax.f32 %v483, 0.0
      %v518 = vmax.f32 %v485, 0.0
      %v519 = vpack.c.bf16 %v488, %v487
      %v520 = vpack.c.bf16 %v490, %v489
      %v521 = vpack.c.bf16 %v492, %v491
      %v522 = vpack.c.bf16 %v494, %v493
      %v523 = vpack.c.bf16 %v496, %v495
      %v524 = vpack.c.bf16 %v498, %v497
      %v525 = vpack.c.bf16 %v500, %v499
      %v526 = vpack.c.bf16 %v502, %v501
      %v527 = vpack.c.bf16 %v504, %v503
      %v528 = vpack.c.bf16 %v506, %v505
      %v529 = vpack.c.bf16 %v508, %v507
      %v530 = vpack.c.bf16 %v510, %v509
      %v531 = vpack.c.bf16 %v512, %v511
      %v532 = vpack.c.bf16 %v514, %v513
      %v533 = vpack.c.bf16 %v516, %v515
      %v534 = vpack.c.bf16 %v518, %v517
      %v535 = vld [vmem:[%s2] sm:$0xf]
      %v536 = vld [vmem:[%s2 + $0x4] sm:$0xf]
      %v537 = vld [vmem:[%s2 + $0x8] sm:$0xf]
      %v538 = vld [vmem:[%s2 + $0xc] sm:$0xf]
      %v539 = vld [vmem:[%s2 + $0x10] sm:$0xf]
      %v540 = vld [vmem:[%s2 + $0x14] sm:$0xf]
      %v541 = vld [vmem:[%s2 + $0x18] sm:$0xf]
      %v542 = vld [vmem:[%s2 + $0x1c] sm:$0xf]
      %v543 = vld [vmem:[%s2 + $0x20] sm:$0xf]
      %v544 = vld [vmem:[%s2 + $0x24] sm:$0xf]
      %v545 = vld [vmem:[%s2 + $0x28] sm:$0xf]
      %v546 = vld [vmem:[%s2 + $0x2c] sm:$0xf]
      %v547 = vld [vmem:[%s2 + $0x30] sm:$0xf]
      %v548 = vld [vmem:[%s2 + $0x34] sm:$0xf]
      %v549 = vld [vmem:[%s2 + $0x38] sm:$0xf]
      %v550 = vld [vmem:[%s2 + $0x3c] sm:$0xf]
      %v551 = vperm.slane %v331, 1
      %v568 = vunpack.c.l.b16 %v535
      %v569 = vunpack.c.l.b16 %v536
      %v570 = vunpack.c.l.b16 %v537
      %v571 = vunpack.c.l.b16 %v538
      %v572 = vunpack.c.l.b16 %v539
      %v573 = vunpack.c.l.b16 %v540
      %v574 = vunpack.c.l.b16 %v541
      %v575 = vunpack.c.l.b16 %v542
      %v576 = vunpack.c.l.b16 %v543
      %v577 = vunpack.c.l.b16 %v544
      %v578 = vunpack.c.l.b16 %v545
      %v579 = vunpack.c.l.b16 %v546
      %v580 = vunpack.c.l.b16 %v547
      %v581 = vunpack.c.l.b16 %v548
      %v582 = vunpack.c.l.b16 %v549
      %v583 = vunpack.c.l.b16 %v550
      %v584 = vpack.c.b16 %v569, %v568
      %v585 = vpack.c.b16 %v571, %v570
      %v586 = vpack.c.b16 %v573, %v572
      %v587 = vpack.c.b16 %v575, %v574
      %v588 = vpack.c.b16 %v577, %v576
      %v589 = vpack.c.b16 %v579, %v578
      %v590 = vpack.c.b16 %v581, %v580
      %v591 = vpack.c.b16 %v583, %v582
      %600 = vmatpush.bf16.msra.mxu0 %v591
      %601 = vmatpush.bf16.msra.mxu0 %v590
      %602 = vmatpush.bf16.msra.mxu0 %v589
      %603 = vmatpush.bf16.msra.mxu0 %v588
      %604 = vmatpush.bf16.msra.mxu0 %v587
      %605 = vmatpush.bf16.msra.mxu0 %v586
      %606 = vmatpush.bf16.msra.mxu0 %v585
      %607 = vmatpush.bf16.msra.mxu0 %v584
      %608 = vmatmul.bf16.gmra.mxu0 %v519
      %v609 = vpop.f32.mrf.mxu0
      %v610 = vadd.f32 %v551, %v609
      %v611 = vpop.f32.mrf.mxu0
      %v612 = vadd.f32 %v551, %v611
      %613 = vmatmul.bf16.gmra.mxu0 %v520
      %v614 = vpop.f32.mrf.mxu0
      %v615 = vadd.f32 %v551, %v614
      %v616 = vpop.f32.mrf.mxu0
      %v617 = vadd.f32 %v551, %v616
      %618 = vmatmul.bf16.gmra.mxu0 %v521
      %v619 = vpop.f32.mrf.mxu0
      %v620 = vadd.f32 %v551, %v619
      %v621 = vpop.f32.mrf.mxu0
      %v622 = vadd.f32 %v551, %v621
      %623 = vmatmul.bf16.gmra.mxu0 %v522
      %v624 = vpop.f32.mrf.mxu0
      %v625 = vadd.f32 %v551, %v624
      %v626 = vpop.f32.mrf.mxu0
      %v627 = vadd.f32 %v551, %v626
      %628 = vmatmul.bf16.gmra.mxu0 %v523
      %v629 = vpop.f32.mrf.mxu0
      %v630 = vadd.f32 %v551, %v629
      %v631 = vpop.f32.mrf.mxu0
      %v632 = vadd.f32 %v551, %v631
      %633 = vmatmul.bf16.gmra.mxu0 %v524
      %v634 = vpop.f32.mrf.mxu0
      %v635 = vadd.f32 %v551, %v634
      %v636 = vpop.f32.mrf.mxu0
      %v637 = vadd.f32 %v551, %v636
      %638 = vmatmul.bf16.gmra.mxu0 %v525
      %v639 = vpop.f32.mrf.mxu0
      %v640 = vadd.f32 %v551, %v639
      %v641 = vpop.f32.mrf.mxu0
      %v642 = vadd.f32 %v551, %v641
      %643 = vmatmul.bf16.gmra.mxu0 %v526
      %v644 = vpop.f32.mrf.mxu0
      %v645 = vadd.f32 %v551, %v644
      %v646 = vpop.f32.mrf.mxu0
      %v647 = vadd.f32 %v551, %v646
      %648 = vmatmul.bf16.gmra.mxu0 %v527
      %v649 = vpop.f32.mrf.mxu0
      %v650 = vadd.f32 %v551, %v649
      %v651 = vpop.f32.mrf.mxu0
      %v652 = vadd.f32 %v551, %v651
      %653 = vmatmul.bf16.gmra.mxu0 %v528
      %v654 = vpop.f32.mrf.mxu0
      %v655 = vadd.f32 %v551, %v654
      %v656 = vpop.f32.mrf.mxu0
      %v657 = vadd.f32 %v551, %v656
      %658 = vmatmul.bf16.gmra.mxu0 %v529
      %v659 = vpop.f32.mrf.mxu0
      %v660 = vadd.f32 %v551, %v659
      %v661 = vpop.f32.mrf.mxu0
      %v662 = vadd.f32 %v551, %v661
      %663 = vmatmul.bf16.gmra.mxu0 %v530
      %v664 = vpop.f32.mrf.mxu0
      %v665 = vadd.f32 %v551, %v664
      %v666 = vpop.f32.mrf.mxu0
      %v667 = vadd.f32 %v551, %v666
      %668 = vmatmul.bf16.gmra.mxu0 %v531
      %v669 = vpop.f32.mrf.mxu0
      %v670 = vadd.f32 %v551, %v669
      %v671 = vpop.f32.mrf.mxu0
      %v672 = vadd.f32 %v551, %v671
      %673 = vmatmul.bf16.gmra.mxu0 %v532
      %v674 = vpop.f32.mrf.mxu0
      %v675 = vadd.f32 %v551, %v674
      %v676 = vpop.f32.mrf.mxu0
      %v677 = vadd.f32 %v551, %v676
      %678 = vmatmul.bf16.gmra.mxu0 %v533
      %v679 = vpop.f32.mrf.mxu0
      %v680 = vadd.f32 %v551, %v679
      %v681 = vpop.f32.mrf.mxu0
      %v682 = vadd.f32 %v551, %v681
      %683 = vmatmul.bf16.gmra.mxu0 %v534
      %v684 = vpop.f32.mrf.mxu0
      %v685 = vadd.f32 %v551, %v684
      %v686 = vpop.f32.mrf.mxu0
      %v687 = vadd.f32 %v551, %v686
      %688 = vdwg.mxu0
      %v689 = vmax.f32 %v610, 0.0
      %v690 = vmax.f32 %v612, 0.0
      %v691 = vmax.f32 %v615, 0.0
      %v692 = vmax.f32 %v617, 0.0
      %v693 = vmax.f32 %v620, 0.0
      %v694 = vmax.f32 %v622, 0.0
      %v695 = vmax.f32 %v625, 0.0
      %v696 = vmax.f32 %v627, 0.0
      %v697 = vmax.f32 %v630, 0.0
      %v698 = vmax.f32 %v632, 0.0
      %v699 = vmax.f32 %v635, 0.0
      %v700 = vmax.f32 %v637, 0.0
      %v701 = vmax.f32 %v640, 0.0
      %v702 = vmax.f32 %v642, 0.0
      %v703 = vmax.f32 %v645, 0.0
      %v704 = vmax.f32 %v647, 0.0
      %v705 = vmax.f32 %v650, 0.0
      %v706 = vmax.f32 %v652, 0.0
      %v707 = vmax.f32 %v655, 0.0
      %v708 = vmax.f32 %v657, 0.0
      %v709 = vmax.f32 %v660, 0.0
      %v710 = vmax.f32 %v662, 0.0
      %v711 = vmax.f32 %v665, 0.0
      %v712 = vmax.f32 %v667, 0.0
      %v713 = vmax.f32 %v670, 0.0
      %v714 = vmax.f32 %v672, 0.0
      %v715 = vmax.f32 %v675, 0.0
      %v716 = vmax.f32 %v677, 0.0
      %v717 = vmax.f32 %v680, 0.0
      %v718 = vmax.f32 %v682, 0.0
      %v719 = vmax.f32 %v685, 0.0
      %v720 = vmax.f32 %v687, 0.0
      %v721 = vpack.c.bf16 %v690, %v689
      %v722 = vpack.c.bf16 %v692, %v691
      %v723 = vpack.c.bf16 %v694, %v693
      %v724 = vpack.c.bf16 %v696, %v695
      %v725 = vpack.c.bf16 %v698, %v697
      %v726 = vpack.c.bf16 %v700, %v699
      %v727 = vpack.c.bf16 %v702, %v701
      %v728 = vpack.c.bf16 %v704, %v703
      %v729 = vpack.c.bf16 %v706, %v705
      %v730 = vpack.c.bf16 %v708, %v707
      %v731 = vpack.c.bf16 %v710, %v709
      %v732 = vpack.c.bf16 %v712, %v711
      %v733 = vpack.c.bf16 %v714, %v713
      %v734 = vpack.c.bf16 %v716, %v715
      %v735 = vpack.c.bf16 %v718, %v717
      %v736 = vpack.c.bf16 %v720, %v719
      %v737 = vld [vmem:[%s3] sm:$0xf]
      %v738 = vld [vmem:[%s3 + $0x4] sm:$0xf]
      %v739 = vld [vmem:[%s3 + $0x8] sm:$0xf]
      %v740 = vld [vmem:[%s3 + $0xc] sm:$0xf]
      %v741 = vld [vmem:[%s3 + $0x10] sm:$0xf]
      %v742 = vld [vmem:[%s3 + $0x14] sm:$0xf]
      %v743 = vld [vmem:[%s3 + $0x18] sm:$0xf]
      %v744 = vld [vmem:[%s3 + $0x1c] sm:$0xf]
      %v745 = vld [vmem:[%s3 + $0x20] sm:$0xf]
      %v746 = vld [vmem:[%s3 + $0x24] sm:$0xf]
      %v747 = vld [vmem:[%s3 + $0x28] sm:$0xf]
      %v748 = vld [vmem:[%s3 + $0x2c] sm:$0xf]
      %v749 = vld [vmem:[%s3 + $0x30] sm:$0xf]
      %v750 = vld [vmem:[%s3 + $0x34] sm:$0xf]
      %v751 = vld [vmem:[%s3 + $0x38] sm:$0xf]
      %v752 = vld [vmem:[%s3 + $0x3c] sm:$0xf]
      %v753 = vperm.slane %v331, 2
      %v770 = vunpack.c.l.b16 %v737
      %v771 = vunpack.c.l.b16 %v738
      %v772 = vunpack.c.l.b16 %v739
      %v773 = vunpack.c.l.b16 %v740
      %v774 = vunpack.c.l.b16 %v741
      %v775 = vunpack.c.l.b16 %v742
      %v776 = vunpack.c.l.b16 %v743
      %v777 = vunpack.c.l.b16 %v744
      %v778 = vunpack.c.l.b16 %v745
      %v779 = vunpack.c.l.b16 %v746
      %v780 = vunpack.c.l.b16 %v747
      %v781 = vunpack.c.l.b16 %v748
      %v782 = vunpack.c.l.b16 %v749
      %v783 = vunpack.c.l.b16 %v750
      %v784 = vunpack.c.l.b16 %v751
      %v785 = vunpack.c.l.b16 %v752
      %v786 = vpack.c.b16 %v771, %v770
      %v787 = vpack.c.b16 %v773, %v772
      %v788 = vpack.c.b16 %v775, %v774
      %v789 = vpack.c.b16 %v777, %v776
      %v790 = vpack.c.b16 %v779, %v778
      %v791 = vpack.c.b16 %v781, %v780
      %v792 = vpack.c.b16 %v783, %v782
      %v793 = vpack.c.b16 %v785, %v784
      %802 = vmatpush.bf16.msra.mxu0 %v793
      %803 = vmatpush.bf16.msra.mxu0 %v792
      %804 = vmatpush.bf16.msra.mxu0 %v791
      %805 = vmatpush.bf16.msra.mxu0 %v790
      %806 = vmatpush.bf16.msra.mxu0 %v789
      %807 = vmatpush.bf16.msra.mxu0 %v788
      %808 = vmatpush.bf16.msra.mxu0 %v787
      %809 = vmatpush.bf16.msra.mxu0 %v786
      %810 = vmatmul.bf16.gmra.mxu0 %v721
      %v811 = vpop.f32.mrf.mxu0
      %v812 = vadd.f32 %v753, %v811
      %v813 = vpop.f32.mrf.mxu0
      %v814 = vadd.f32 %v753, %v813
      %815 = vmatmul.bf16.gmra.mxu0 %v722
      %v816 = vpop.f32.mrf.mxu0
      %v817 = vadd.f32 %v753, %v816
      %v818 = vpop.f32.mrf.mxu0
      %v819 = vadd.f32 %v753, %v818
      %820 = vmatmul.bf16.gmra.mxu0 %v723
      %v821 = vpop.f32.mrf.mxu0
      %v822 = vadd.f32 %v753, %v821
      %v823 = vpop.f32.mrf.mxu0
      %v824 = vadd.f32 %v753, %v823
      %825 = vmatmul.bf16.gmra.mxu0 %v724
      %v826 = vpop.f32.mrf.mxu0
      %v827 = vadd.f32 %v753, %v826
      %v828 = vpop.f32.mrf.mxu0
      %v829 = vadd.f32 %v753, %v828
      %830 = vmatmul.bf16.gmra.mxu0 %v725
      %v831 = vpop.f32.mrf.mxu0
      %v832 = vadd.f32 %v753, %v831
      %v833 = vpop.f32.mrf.mxu0
      %v834 = vadd.f32 %v753, %v833
      %835 = vmatmul.bf16.gmra.mxu0 %v726
      %v836 = vpop.f32.mrf.mxu0
      %v837 = vadd.f32 %v753, %v836
      %v838 = vpop.f32.mrf.mxu0
      %v839 = vadd.f32 %v753, %v838
      %840 = vmatmul.bf16.gmra.mxu0 %v727
      %v841 = vpop.f32.mrf.mxu0
      %v842 = vadd.f32 %v753, %v841
      %v843 = vpop.f32.mrf.mxu0
      %v844 = vadd.f32 %v753, %v843
      %845 = vmatmul.bf16.gmra.mxu0 %v728
      %v846 = vpop.f32.mrf.mxu0
      %v847 = vadd.f32 %v753, %v846
      %v848 = vpop.f32.mrf.mxu0
      %v849 = vadd.f32 %v753, %v848
      %850 = vmatmul.bf16.gmra.mxu0 %v729
      %v851 = vpop.f32.mrf.mxu0
      %v852 = vadd.f32 %v753, %v851
      %v853 = vpop.f32.mrf.mxu0
      %v854 = vadd.f32 %v753, %v853
      %855 = vmatmul.bf16.gmra.mxu0 %v730
      %v856 = vpop.f32.mrf.mxu0
      %v857 = vadd.f32 %v753, %v856
      %v858 = vpop.f32.mrf.mxu0
      %v859 = vadd.f32 %v753, %v858
      %860 = vmatmul.bf16.gmra.mxu0 %v731
      %v861 = vpop.f32.mrf.mxu0
      %v862 = vadd.f32 %v753, %v861
      %v863 = vpop.f32.mrf.mxu0
      %v864 = vadd.f32 %v753, %v863
      %865 = vmatmul.bf16.gmra.mxu0 %v732
      %v866 = vpop.f32.mrf.mxu0
      %v867 = vadd.f32 %v753, %v866
      %v868 = vpop.f32.mrf.mxu0
      %v869 = vadd.f32 %v753, %v868
      %870 = vmatmul.bf16.gmra.mxu0 %v733
      %v871 = vpop.f32.mrf.mxu0
      %v872 = vadd.f32 %v753, %v871
      %v873 = vpop.f32.mrf.mxu0
      %v874 = vadd.f32 %v753, %v873
      %875 = vmatmul.bf16.gmra.mxu0 %v734
      %v876 = vpop.f32.mrf.mxu0
      %v877 = vadd.f32 %v753, %v876
      %v878 = vpop.f32.mrf.mxu0
      %v879 = vadd.f32 %v753, %v878
      %880 = vmatmul.bf16.gmra.mxu0 %v735
      %v881 = vpop.f32.mrf.mxu0
      %v882 = vadd.f32 %v753, %v881
      %v883 = vpop.f32.mrf.mxu0
      %v884 = vadd.f32 %v753, %v883
      %885 = vmatmul.bf16.gmra.mxu0 %v736
      %v886 = vpop.f32.mrf.mxu0
      %v887 = vadd.f32 %v753, %v886
      %v888 = vpop.f32.mrf.mxu0
      %v889 = vadd.f32 %v753, %v888
      %890 = vdwg.mxu0
      %v891 = vmax.f32 %v812, 0.0
      %v892 = vmax.f32 %v814, 0.0
      %v893 = vmax.f32 %v817, 0.0
      %v894 = vmax.f32 %v819, 0.0
      %v895 = vmax.f32 %v822, 0.0
      %v896 = vmax.f32 %v824, 0.0
      %v897 = vmax.f32 %v827, 0.0
      %v898 = vmax.f32 %v829, 0.0
      %v899 = vmax.f32 %v832, 0.0
      %v900 = vmax.f32 %v834, 0.0
      %v901 = vmax.f32 %v837, 0.0
      %v902 = vmax.f32 %v839, 0.0
      %v903 = vmax.f32 %v842, 0.0
      %v904 = vmax.f32 %v844, 0.0
      %v905 = vmax.f32 %v847, 0.0
      %v906 = vmax.f32 %v849, 0.0
      %v907 = vmax.f32 %v852, 0.0
      %v908 = vmax.f32 %v854, 0.0
      %v909 = vmax.f32 %v857, 0.0
      %v910 = vmax.f32 %v859, 0.0
      %v911 = vmax.f32 %v862, 0.0
      %v912 = vmax.f32 %v864, 0.0
      %v913 = vmax.f32 %v867, 0.0
      %v914 = vmax.f32 %v869, 0.0
      %v915 = vmax.f32 %v872, 0.0
      %v916 = vmax.f32 %v874, 0.0
      %v917 = vmax.f32 %v877, 0.0
      %v918 = vmax.f32 %v879, 0.0
      %v919 = vmax.f32 %v882, 0.0
      %v920 = vmax.f32 %v884, 0.0
      %v921 = vmax.f32 %v887, 0.0
      %v922 = vmax.f32 %v889, 0.0
      %v923 = vpack.c.bf16 %v892, %v891
      %v924 = vpack.c.bf16 %v894, %v893
      %v925 = vpack.c.bf16 %v896, %v895
      %v926 = vpack.c.bf16 %v898, %v897
      %v927 = vpack.c.bf16 %v900, %v899
      %v928 = vpack.c.bf16 %v902, %v901
      %v929 = vpack.c.bf16 %v904, %v903
      %v930 = vpack.c.bf16 %v906, %v905
      %v931 = vpack.c.bf16 %v908, %v907
      %v932 = vpack.c.bf16 %v910, %v909
      %v933 = vpack.c.bf16 %v912, %v911
      %v934 = vpack.c.bf16 %v914, %v913
      %v935 = vpack.c.bf16 %v916, %v915
      %v936 = vpack.c.bf16 %v918, %v917
      %v937 = vpack.c.bf16 %v920, %v919
      %v938 = vpack.c.bf16 %v922, %v921
      %v939 = vld [vmem:[%s4] sm:$0xf]
      %v940 = vld [vmem:[%s4 + $0x4] sm:$0xf]
      %v941 = vld [vmem:[%s4 + $0x8] sm:$0xf]
      %v942 = vld [vmem:[%s4 + $0xc] sm:$0xf]
      %v943 = vld [vmem:[%s4 + $0x10] sm:$0xf]
      %v944 = vld [vmem:[%s4 + $0x14] sm:$0xf]
      %v945 = vld [vmem:[%s4 + $0x18] sm:$0xf]
      %v946 = vld [vmem:[%s4 + $0x1c] sm:$0xf]
      %v947 = vld [vmem:[%s4 + $0x20] sm:$0xf]
      %v948 = vld [vmem:[%s4 + $0x24] sm:$0xf]
      %v949 = vld [vmem:[%s4 + $0x28] sm:$0xf]
      %v950 = vld [vmem:[%s4 + $0x2c] sm:$0xf]
      %v951 = vld [vmem:[%s4 + $0x30] sm:$0xf]
      %v952 = vld [vmem:[%s4 + $0x34] sm:$0xf]
      %v953 = vld [vmem:[%s4 + $0x38] sm:$0xf]
      %v954 = vld [vmem:[%s4 + $0x3c] sm:$0xf]
      %v955 = vld [vmem:[%s6] sm:$0x1]
      %v957 = vperm.slane %v955, 0
      %v975 = vunpack.c.l.b16 %v939
      %v976 = vunpack.c.l.b16 %v940
      %v977 = vunpack.c.l.b16 %v941
      %v978 = vunpack.c.l.b16 %v942
      %v979 = vunpack.c.l.b16 %v943
      %v980 = vunpack.c.l.b16 %v944
      %v981 = vunpack.c.l.b16 %v945
      %v982 = vunpack.c.l.b16 %v946
      %v983 = vunpack.c.l.b16 %v947
      %v984 = vunpack.c.l.b16 %v948
      %v985 = vunpack.c.l.b16 %v949
      %v986 = vunpack.c.l.b16 %v950
      %v987 = vunpack.c.l.b16 %v951
      %v988 = vunpack.c.l.b16 %v952
      %v989 = vunpack.c.l.b16 %v953
      %v990 = vunpack.c.l.b16 %v954
      %v991 = vpack.c.b16 %v976, %v975
      %v992 = vpack.c.b16 %v978, %v977
      %v993 = vpack.c.b16 %v980, %v979
      %v994 = vpack.c.b16 %v982, %v981
      %v995 = vpack.c.b16 %v984, %v983
      %v996 = vpack.c.b16 %v986, %v985
      %v997 = vpack.c.b16 %v988, %v987
      %v998 = vpack.c.b16 %v990, %v989
      %1007 = vmatpush.bf16.msra.mxu0 %v998
      %1008 = vmatpush.bf16.msra.mxu0 %v997
      %1009 = vmatpush.bf16.msra.mxu0 %v996
      %1010 = vmatpush.bf16.msra.mxu0 %v995
      %1011 = vmatpush.bf16.msra.mxu0 %v994
      %1012 = vmatpush.bf16.msra.mxu0 %v993
      %1013 = vmatpush.bf16.msra.mxu0 %v992
      %1014 = vmatpush.bf16.msra.mxu0 %v991
      %1015 = vmatmul.bf16.gmra.mxu0 %v923
      %v1016 = vpop.f32.mrf.mxu0
      %v1017 = vadd.f32 %v957, %v1016
      %v1018 = vpop.f32.mrf.mxu0
      %v1019 = vadd.f32 %v957, %v1018
      %1020 = vmatmul.bf16.gmra.mxu0 %v924
      %v1021 = vpop.f32.mrf.mxu0
      %v1022 = vadd.f32 %v957, %v1021
      %v1023 = vpop.f32.mrf.mxu0
      %v1024 = vadd.f32 %v957, %v1023
      %1025 = vmatmul.bf16.gmra.mxu0 %v925
      %v1026 = vpop.f32.mrf.mxu0
      %v1027 = vadd.f32 %v957, %v1026
      %v1028 = vpop.f32.mrf.mxu0
      %v1029 = vadd.f32 %v957, %v1028
      %1030 = vmatmul.bf16.gmra.mxu0 %v926
      %v1031 = vpop.f32.mrf.mxu0
      %v1032 = vadd.f32 %v957, %v1031
      %v1033 = vpop.f32.mrf.mxu0
      %v1034 = vadd.f32 %v957, %v1033
      %1035 = vmatmul.bf16.gmra.mxu0 %v927
      %v1036 = vpop.f32.mrf.mxu0
      %v1037 = vadd.f32 %v957, %v1036
      %v1038 = vpop.f32.mrf.mxu0
      %v1039 = vadd.f32 %v957, %v1038
      %1040 = vmatmul.bf16.gmra.mxu0 %v928
      %v1041 = vpop.f32.mrf.mxu0
      %v1042 = vadd.f32 %v957, %v1041
      %v1043 = vpop.f32.mrf.mxu0
      %v1044 = vadd.f32 %v957, %v1043
      %1045 = vmatmul.bf16.gmra.mxu0 %v929
      %v1046 = vpop.f32.mrf.mxu0
      %v1047 = vadd.f32 %v957, %v1046
      %v1048 = vpop.f32.mrf.mxu0
      %v1049 = vadd.f32 %v957, %v1048
      %1050 = vmatmul.bf16.gmra.mxu0 %v930
      %v1051 = vpop.f32.mrf.mxu0
      %v1052 = vadd.f32 %v957, %v1051
      %v1053 = vpop.f32.mrf.mxu0
      %v1054 = vadd.f32 %v957, %v1053
      %1055 = vmatmul.bf16.gmra.mxu0 %v931
      %v1056 = vpop.f32.mrf.mxu0
      %v1057 = vadd.f32 %v957, %v1056
      %v1058 = vpop.f32.mrf.mxu0
      %v1059 = vadd.f32 %v957, %v1058
      %1060 = vmatmul.bf16.gmra.mxu0 %v932
      %v1061 = vpop.f32.mrf.mxu0
      %v1062 = vadd.f32 %v957, %v1061
      %v1063 = vpop.f32.mrf.mxu0
      %v1064 = vadd.f32 %v957, %v1063
      %1065 = vmatmul.bf16.gmra.mxu0 %v933
      %v1066 = vpop.f32.mrf.mxu0
      %v1067 = vadd.f32 %v957, %v1066
      %v1068 = vpop.f32.mrf.mxu0
      %v1069 = vadd.f32 %v957, %v1068
      %1070 = vmatmul.bf16.gmra.mxu0 %v934
      %v1071 = vpop.f32.mrf.mxu0
      %v1072 = vadd.f32 %v957, %v1071
      %v1073 = vpop.f32.mrf.mxu0
      %v1074 = vadd.f32 %v957, %v1073
      %1075 = vmatmul.bf16.gmra.mxu0 %v935
      %v1076 = vpop.f32.mrf.mxu0
      %v1077 = vadd.f32 %v957, %v1076
      %v1078 = vpop.f32.mrf.mxu0
      %v1079 = vadd.f32 %v957, %v1078
      %1080 = vmatmul.bf16.gmra.mxu0 %v936
      %v1081 = vpop.f32.mrf.mxu0
      %v1082 = vadd.f32 %v957, %v1081
      %v1083 = vpop.f32.mrf.mxu0
      %v1084 = vadd.f32 %v957, %v1083
      %1085 = vmatmul.bf16.gmra.mxu0 %v937
      %v1086 = vpop.f32.mrf.mxu0
      %v1087 = vadd.f32 %v957, %v1086
      %v1088 = vpop.f32.mrf.mxu0
      %v1089 = vadd.f32 %v957, %v1088
      %1090 = vmatmul.bf16.gmra.mxu0 %v938
      %v1091 = vpop.f32.mrf.mxu0
      %v1092 = vadd.f32 %v957, %v1091
      %v1093 = vpop.f32.mrf.mxu0
      %v1094 = vadd.f32 %v957, %v1093
      %1095 = vdwg.mxu0
      %vm1096 = vcmask 23552
      %1097 = vst.msk [vmem:[%s280] sm:$0xff] %vm1096, %v1017
      %1098 = vst.msk [vmem:[%s280 + $0x8] sm:$0xff] %vm1096, %v1019
      %1099 = vst.msk [vmem:[%s280 + $0x10] sm:$0xff] %vm1096, %v1022
      %1100 = vst.msk [vmem:[%s280 + $0x18] sm:$0xff] %vm1096, %v1024
      %1101 = vst.msk [vmem:[%s280 + $0x20] sm:$0xff] %vm1096, %v1027
      %1102 = vst.msk [vmem:[%s280 + $0x28] sm:$0xff] %vm1096, %v1029
      %1103 = vst.msk [vmem:[%s280 + $0x30] sm:$0xff] %vm1096, %v1032
      %1104 = vst.msk [vmem:[%s280 + $0x38] sm:$0xff] %vm1096, %v1034
      %1105 = vst.msk [vmem:[%s280 + $0x40] sm:$0xff] %vm1096, %v1037
      %1106 = vst.msk [vmem:[%s280 + $0x48] sm:$0xff] %vm1096, %v1039
      %1107 = vst.msk [vmem:[%s280 + $0x50] sm:$0xff] %vm1096, %v1042
      %1108 = vst.msk [vmem:[%s280 + $0x58] sm:$0xff] %vm1096, %v1044
      %1109 = vst.msk [vmem:[%s280 + $0x60] sm:$0xff] %vm1096, %v1047
      %1110 = vst.msk [vmem:[%s280 + $0x68] sm:$0xff] %vm1096, %v1049
      %1111 = vst.msk [vmem:[%s280 + $0x70] sm:$0xff] %vm1096, %v1052
      %1112 = vst.msk [vmem:[%s280 + $0x78] sm:$0xff] %vm1096, %v1054
      %1113 = vst.msk [vmem:[%s280 + $0x80] sm:$0xff] %vm1096, %v1057
      %1114 = vst.msk [vmem:[%s280 + $0x88] sm:$0xff] %vm1096, %v1059
      %1115 = vst.msk [vmem:[%s280 + $0x90] sm:$0xff] %vm1096, %v1062
      %1116 = vst.msk [vmem:[%s280 + $0x98] sm:$0xff] %vm1096, %v1064
      %1117 = vst.msk [vmem:[%s280 + $0xa0] sm:$0xff] %vm1096, %v1067
      %1118 = vst.msk [vmem:[%s280 + $0xa8] sm:$0xff] %vm1096, %v1069
      %1119 = vst.msk [vmem:[%s280 + $0xb0] sm:$0xff] %vm1096, %v1072
      %1120 = vst.msk [vmem:[%s280 + $0xb8] sm:$0xff] %vm1096, %v1074
      %1121 = vst.msk [vmem:[%s280 + $0xc0] sm:$0xff] %vm1096, %v1077
      %1122 = vst.msk [vmem:[%s280 + $0xc8] sm:$0xff] %vm1096, %v1079
      %1123 = vst.msk [vmem:[%s280 + $0xd0] sm:$0xff] %vm1096, %v1082
      %1124 = vst.msk [vmem:[%s280 + $0xd8] sm:$0xff] %vm1096, %v1084
      %1125 = vst.msk [vmem:[%s280 + $0xe0] sm:$0xff] %vm1096, %v1087
      %1126 = vst.msk [vmem:[%s280 + $0xe8] sm:$0xff] %vm1096, %v1089
      %1127 = vst.msk [vmem:[%s280 + $0xf0] sm:$0xff] %vm1096, %v1092
      %1128 = vst.msk [vmem:[%s280 + $0xf8] sm:$0xff] %vm1096, %v1094
      %s1129 = smul.u32 32, %s18
      %p1130 = scmp.lt.s32.totalorder %s1129, 63
      %s1131 = scalar_select %p1130, %s1129, 63
      %s1132 = smul.addr %s1131, 8
      %s1133 = scalar_lea.vmem %s7, %s1132
      // Predicated region
      $region49: #{mlp_forward.1} parent=47 // pred_check
        %p1134 = pneg %p188
      $region50: #{mlp_forward.1} parent=47 // pred_check_branch
        %1136 = sbr.rel (%p1134) target = $region52
      $region51: #{mlp_forward.1} parent=47 // pred_region
        %s1137 = smul.u32 32, %s18
      $region52: #{mlp_forward.1} parent=47 // pred_fallthru
        _
    $region48: #{mlp_forward.1} parent=5 // pred_fallthru
      _
    %p1138 = scmp.le.s32.totalorder 2, %s13
    // Predicated region
    $region53: #{mlp_forward.1} parent=5 // pred_check
      %p1139 = pneg %p1138
    $region54: #{mlp_forward.1} parent=5 // pred_check_branch
      %1141 = sbr.rel (%p1139) target = $region56
    $region55: #{mlp_forward.1} parent=5 // pred_region
      %s1142 = ssub.s32 %s13, 2
      // Predicated region
      $region57: #{mlp_forward.1} parent=55 // pred_check
        %p1143 = pneg %p194
      $region58: #{mlp_forward.1} parent=55 // pred_check_branch
        %1145 = sbr.rel (%p1143) target = $region60
      $region59: #{mlp_forward.1} parent=55 // pred_region
        %s1146 = smul.u32 32, %s19
        %p1147 = scmp.lt.s32.totalorder %s1146, 63
        %s1148 = scalar_select %p1147, %s1146, 63
        %s1149 = smul.addr %s1148, 8
        %s1150 = scalar_lea.vmem %s7, %s1149
      $region60: #{mlp_forward.1} parent=55 // pred_fallthru
        _
    $region56: #{mlp_forward.1} parent=5 // pred_fallthru
      _
  $region6: #{mlp_forward.1} parent=0 // loop_footer
    %s17 = sadd.s32 1, %s13
  $region7: #{mlp_forward.1} parent=0 // loop_footer_branch
    %12 = sbr.rel target = $region3
  $region8: #{mlp_forward.1} parent=0 // loop_exit
    _

</llo_original>
